<compile_context>
chip_gen: v7x
topology: tpu7x:2x2x1
jax: 0.10.0
libtpu: 0.0.40
codegen_flags: <defaults>
</compile_context>

<pallas_src>
import functools

import jax
import jax.numpy as jnp
from jax.experimental import pallas as pl
from jax.experimental.pallas import tpu as pltpu

_LANES = 128  # TPU vreg lane width


def _eps_loss_kernel(xw_ref, o_ref, *, H, W, ppw, inv_gamma, s1, s2, s34):
    """One lane-group of the fused 4-direction bilateral smoothness reduction.

    xw_ref: (C+1, H, LG) f32  plane 0 = inputs, planes 1..C = guide weights;
                              patches packed along the 128-wide lane axis
                              (ppw = data-carrying lanes, LG multiple of 128).
    o_ref : (1, 1) f32 SMEM   this group's pre-scaled partial sum.
    """
    P = xw_ref.shape[0]     # C + 1 planes
    LG = xw_ref.shape[2]

    # Collapse planes into the sublane axis so the neighbor fetch is 3 XLU rolls
    # on one 2-D slab (instead of 3 rolls per channel plane).
    slab = xw_ref[...].reshape(P * H, LG)

    # roll(a, shift=N-1) == roll by -1: result[k] = a[(k+1) mod N].  Wrapped
    # rows/lanes (patch boundaries, last row, cross-plane wrap, pad lanes) are
    # zeroed by the masks below.
    slab_r = pltpu.roll(slab, shift=LG - 1, axis=1)          # (i, j+1)
    slab_d = pltpu.roll(slab, shift=P * H - 1, axis=0)       # (i+1, j)
    slab_dr = pltpu.roll(slab_r, shift=P * H - 1, axis=0)    # (i+1, j+1)

    d_r = jnp.abs(slab - slab_r)       # horizontal differences, all planes
    d_d = jnp.abs(slab - slab_d)       # vertical
    d_dr = jnp.abs(slab - slab_dr)     # main diagonal
    d_ad = jnp.abs(slab_d - slab_r)    # anti diagonal

    def rows(a, p):                    # static, sublane-aligned plane view
        return a[p * H:(p + 1) * H, :]

    # Channel-summed |delta weights| per direction (planes 1..C, static unroll).
    S1, S2, S3, S4 = rows(d_r, 1), rows(d_d, 1), rows(d_dr, 1), rows(d_ad, 1)
    for c in range(2, P):
        S1 = S1 + rows(d_r, c)
        S2 = S2 + rows(d_d, c)
        S3 = S3 + rows(d_dr, c)
        S4 = S4 + rows(d_ad, c)

    # In-kernel boundary / pad-lane masks (iota + compares; no precomputed slab).
    lane = jax.lax.broadcasted_iota(jnp.int32, (H, LG), 1)
    row = jax.lax.broadcasted_iota(jnp.int32, (H, LG), 0)
    if W & (W - 1) == 0:               # patch widths are powers of two here
        col = lane & (W - 1)
    else:
        col = lane % W                 # generic fallback
    in_lanes = lane < ppw                                   # pad-lane / wrap guard
    has_right = jnp.logical_and(col != W - 1, in_lanes)
    has_down = jnp.logical_and(row != H - 1, in_lanes)
    has_diag = jnp.logical_and(has_right, row != H - 1)

    # mean-over-count and the final /4 are compile-time scalars (s1, s2, s34);
    # exp() goes to the EUP slot, masks/mults stay on the VPU.
    term = (jnp.where(has_right, s1, 0.0) * jnp.exp(-S1 * inv_gamma) * rows(d_r, 0)
            + jnp.where(has_down, s2, 0.0) * jnp.exp(-S2 * inv_gamma) * rows(d_d, 0)
            + jnp.where(has_diag, s34, 0.0)
            * (jnp.exp(-S3 * inv_gamma) * rows(d_dr, 0)
               + jnp.exp(-S4 * inv_gamma) * rows(d_ad, 0)))

    # Single fused cross-lane reduction -> this group's partial sum.
    o_ref[0, 0] = jnp.sum(term)


@functools.partial(jax.jit, static_argnames=("gamma",))
def edge_preserving_smoothness_loss(inputs, weights, *, gamma):
    """inputs: (B, H, W); weights: (B, H, W, C). Returns scalar f32 loss."""
    inputs = inputs.astype(jnp.float32)
    weights = weights.astype(jnp.float32)
    B, H, W = inputs.shape
    C = weights.shape[-1]

    # Pack whole patches along the 128-lane axis.  One grid step ("group")
    # handles ppg patches; groups are independent -> "parallel" grid axis
    # (both TensorCores on v7x once B > ppg).
    ppg = max(1, _LANES // W)              # patches per group
    G = -(-B // ppg)                       # grid steps
    Bp = G * ppg                           # batch padded to whole groups
    ppw = ppg * W                          # data-carrying lanes per group
    LG = -(-ppw // _LANES) * _LANES        # group lane width (multiple of 128)

    # Single packed slab: plane 0 = inputs, planes 1..C = weights.  This layout
    # plumbing is inside jit, so it fuses into one XLA fusion feeding the kernel
    # (no separate un-hidden transpose round trips).  Zero-padded patches/lanes
    # contribute exactly 0, so only real counts enter the scales below.
    xw = jnp.concatenate([inputs[..., None], weights], axis=-1)   # (B, H, W, C+1)
    xw = jnp.pad(xw, ((0, Bp - B), (0, 0), (0, 0), (0, 0)))
    xw = jnp.transpose(xw, (3, 1, 0, 2))                          # (C+1, H, Bp, W)
    xw = xw.reshape(C + 1, H, G, ppw)
    xw = jnp.pad(xw, ((0, 0), (0, 0), (0, 0), (0, LG - ppw)))
    xw = xw.reshape(C + 1, H, G * LG)

    # Per-direction compile-time scale: (1/4) * (1/count_k) over the REAL batch.
    s1 = 0.25 / float(B * H * (W - 1))
    s2 = 0.25 / float(B * (H - 1) * W)
    s34 = 0.25 / float(B * (H - 1) * (W - 1))

    kernel = functools.partial(
        _eps_loss_kernel, H=H, W=W, ppw=ppw,
        inv_gamma=1.0 / float(gamma), s1=s1, s2=s2, s34=s34)

    partials = pl.pallas_call(
        kernel,
        out_shape=jax.ShapeDtypeStruct((G, 1), jnp.float32),
        grid_spec=pltpu.PrefetchScalarGridSpec(
            num_scalar_prefetch=0,
            grid=(G,),
            in_specs=[pl.BlockSpec((C + 1, H, LG), lambda g: (0, 0, g))],
            out_specs=pl.BlockSpec((1, 1), lambda g: (g, 0),
                                   memory_space=pltpu.MemorySpace.SMEM),
        ),
        # Groups are independent -> parallel (dual TensorCore on v7x when G > 1).
        compiler_params=pltpu.CompilerParams(
            dimension_semantics=("parallel",)),
    )(xw)

    # Scaling note (image-sized inputs): tile H into row strips with a 1-row halo
    # via the index_map and add that axis to the grid; size strips for the
    # per-generation scoped-VMEM defaults (v5e 16 MiB, v6e/v7x 32 MiB; v7x has only
    # 64 MiB physical) and raise vmem_limit_bytes via CompilerParams if needed.
    # On v6e/v7x, split the weights back out as a separate bf16 input to halve
    # their HBM bytes and VALU work; keep f32 on v5e (no bf16 VPU/EUP path).
    #
    # Per-group partials are independent f32 sums (no serial scalar accumulation
    # across grid steps); a single add tree here finishes the reduction.
    return jnp.sum(partials)


def _reference_loss(inputs, weights, gamma):
    """Pure-JAX transcription of the PyTorch forward, for verification."""
    bf = lambda x: jnp.exp(-jnp.sum(jnp.abs(x), axis=-1) / gamma)
    loss = lambda x: jnp.mean(jnp.abs(x))
    w1 = bf(weights[:, :, :-1] - weights[:, :, 1:])
    w2 = bf(weights[:, :-1, :] - weights[:, 1:, :])
    w3 = bf(weights[:, :-1, :-1] - weights[:, 1:, 1:])
    w4 = bf(weights[:, 1:, :-1] - weights[:, :-1, 1:])
    L1 = loss(w1 * (inputs[:, :, :-1] - inputs[:, :, 1:]))
    L2 = loss(w2 * (inputs[:, :-1, :] - inputs[:, 1:, :]))
    L3 = loss(w3 * (inputs[:, :-1, :-1] - inputs[:, 1:, 1:]))
    L4 = loss(w4 * (inputs[:, 1:, :-1] - inputs[:, :-1, 1:]))
    return (L1 + L2 + L3 + L4) / 4


if __name__ == "__main__":
    # args.patch_size = 16, args.bilateral_gamma = 0.1  (deterministic config)
    B, H, W, C = 2, 16, 16, 3
    gamma = 0.1

    key = jax.random.PRNGKey(0)
    k1, k2 = jax.random.split(key)
    inputs = jax.random.normal(k1, (B, H, W), dtype=jnp.float32)       # e.g. depth patch
    weights = jax.random.uniform(k2, (B, H, W, C), dtype=jnp.float32)  # e.g. RGB patch

    out = edge_preserving_smoothness_loss(inputs, weights, gamma=gamma)
    out = jax.block_until_ready(out)

    ref = _reference_loss(inputs, weights, gamma)
    assert jnp.allclose(out, ref, rtol=1e-4, atol=1e-6), (out, ref)

    print("KERNEL_OK")
</pallas_src>

<mosaic_0001>
module attributes {stable_mosaic.version = 11 : i64} {
  func.func @_eps_loss_kernel(%arg0: i32, %arg1: memref<4x16x128xf32, #tpu.memory_space<vmem>>, %arg2: memref<1x1xf32, #tpu.memory_space<smem>>) attributes {dimension_semantics = [#tpu.dimension_semantics<parallel>], iteration_bounds = array<i64: 1>, scalar_prefetch = 0 : i64, scratch_operands = 0 : i64, tpu.core_type = #tpu.core_type<tc>, window_params = [{transform_indices = @transform_0, window_bounds = array<i64: 4, 16, 128>}, {transform_indices = @transform_1, window_bounds = array<i64: 1, 1>}]} {
    %c0 = arith.constant 0 : index
    %c0_0 = arith.constant 0 : index
    %c0_1 = arith.constant 0 : index
    %0 = vector.load %arg1[%c0, %c0_0, %c0_1] : memref<4x16x128xf32, #tpu.memory_space<vmem>>, vector<4x16x128xf32>
    %1 = vector.shape_cast %0 : vector<4x16x128xf32> to vector<64x128xf32>
    %c127_i32 = arith.constant 127 : i32
    %2 = tpu.dynamic_rotate %1 by %c127_i32 dim 1 : vector<64x128xf32>, i32 -> vector<64x128xf32>
    %c63_i32 = arith.constant 63 : i32
    %3 = tpu.dynamic_rotate %1 by %c63_i32 dim 0 : vector<64x128xf32>, i32 -> vector<64x128xf32>
    %c63_i32_2 = arith.constant 63 : i32
    %4 = tpu.dynamic_rotate %2 by %c63_i32_2 dim 0 : vector<64x128xf32>, i32 -> vector<64x128xf32>
    %5 = arith.subf %1, %2 : vector<64x128xf32>
    %6 = math.absf %5 : vector<64x128xf32>
    %7 = arith.subf %1, %3 : vector<64x128xf32>
    %8 = math.absf %7 : vector<64x128xf32>
    %9 = arith.subf %1, %4 : vector<64x128xf32>
    %10 = math.absf %9 : vector<64x128xf32>
    %11 = arith.subf %3, %2 : vector<64x128xf32>
    %12 = math.absf %11 : vector<64x128xf32>
    %13 = vector.extract_strided_slice %6 {offsets = [16, 0], sizes = [16, 128], strides = [1, 1]} : vector<64x128xf32> to vector<16x128xf32>
    %14 = vector.extract_strided_slice %8 {offsets = [16, 0], sizes = [16, 128], strides = [1, 1]} : vector<64x128xf32> to vector<16x128xf32>
    %15 = vector.extract_strided_slice %10 {offsets = [16, 0], sizes = [16, 128], strides = [1, 1]} : vector<64x128xf32> to vector<16x128xf32>
    %16 = vector.extract_strided_slice %12 {offsets = [16, 0], sizes = [16, 128], strides = [1, 1]} : vector<64x128xf32> to vector<16x128xf32>
    %17 = vector.extract_strided_slice %6 {offsets = [32, 0], sizes = [16, 128], strides = [1, 1]} : vector<64x128xf32> to vector<16x128xf32>
    %18 = arith.addf %13, %17 : vector<16x128xf32>
    %19 = vector.extract_strided_slice %8 {offsets = [32, 0], sizes = [16, 128], strides = [1, 1]} : vector<64x128xf32> to vector<16x128xf32>
    %20 = arith.addf %14, %19 : vector<16x128xf32>
    %21 = vector.extract_strided_slice %10 {offsets = [32, 0], sizes = [16, 128], strides = [1, 1]} : vector<64x128xf32> to vector<16x128xf32>
    %22 = arith.addf %15, %21 : vector<16x128xf32>
    %23 = vector.extract_strided_slice %12 {offsets = [32, 0], sizes = [16, 128], strides = [1, 1]} : vector<64x128xf32> to vector<16x128xf32>
    %24 = arith.addf %16, %23 : vector<16x128xf32>
    %25 = vector.extract_strided_slice %6 {offsets = [48, 0], sizes = [16, 128], strides = [1, 1]} : vector<64x128xf32> to vector<16x128xf32>
    %26 = arith.addf %18, %25 : vector<16x128xf32>
    %27 = vector.extract_strided_slice %8 {offsets = [48, 0], sizes = [16, 128], strides = [1, 1]} : vector<64x128xf32> to vector<16x128xf32>
    %28 = arith.addf %20, %27 : vector<16x128xf32>
    %29 = vector.extract_strided_slice %10 {offsets = [48, 0], sizes = [16, 128], strides = [1, 1]} : vector<64x128xf32> to vector<16x128xf32>
    %30 = arith.addf %22, %29 : vector<16x128xf32>
    %31 = vector.extract_strided_slice %12 {offsets = [48, 0], sizes = [16, 128], strides = [1, 1]} : vector<64x128xf32> to vector<16x128xf32>
    %32 = arith.addf %24, %31 : vector<16x128xf32>
    %33 = tpu.iota {dimensions = array<i32: 1>} : vector<16x128xi32>
    %34 = tpu.iota {dimensions = array<i32: 0>} : vector<16x128xi32>
    %c15_i32 = arith.constant 15 : i32
    %35 = vector.broadcast %c15_i32 : i32 to vector<16x128xi32>
    %36 = arith.andi %33, %35 : vector<16x128xi32>
    %c128_i32 = arith.constant 128 : i32
    %37 = vector.broadcast %c128_i32 : i32 to vector<16x128xi32>
    %38 = arith.cmpi slt, %33, %37 : vector<16x128xi32>
    %c15_i32_3 = arith.constant 15 : i32
    %39 = vector.broadcast %c15_i32_3 : i32 to vector<16x128xi32>
    %40 = arith.cmpi ne, %36, %39 : vector<16x128xi32>
    %41 = arith.andi %40, %38 : vector<16x128xi1>
    %c15_i32_4 = arith.constant 15 : i32
    %42 = vector.broadcast %c15_i32_4 : i32 to vector<16x128xi32>
    %43 = arith.cmpi ne, %34, %42 : vector<16x128xi32>
    %44 = arith.andi %43, %38 : vector<16x128xi1>
    %c15_i32_5 = arith.constant 15 : i32
    %45 = vector.broadcast %c15_i32_5 : i32 to vector<16x128xi32>
    %46 = arith.cmpi ne, %34, %45 : vector<16x128xi32>
    %47 = arith.andi %41, %46 : vector<16x128xi1>
    %cst = arith.constant 5.2083336E-4 : f32
    %cst_6 = arith.constant 0.000000e+00 : f32
    %48 = vector.broadcast %cst : f32 to vector<16x128xf32>
    %49 = vector.broadcast %cst_6 : f32 to vector<16x128xf32>
    %50 = arith.select %41, %48, %49 : vector<16x128xi1>, vector<16x128xf32>
    %cst_7 = arith.constant 0.000000e+00 : f32
    %51 = vector.broadcast %cst_7 : f32 to vector<16x128xf32>
    %52 = arith.subf %51, %26 : vector<16x128xf32>
    %cst_8 = arith.constant 1.000000e+01 : f32
    %53 = vector.broadcast %cst_8 : f32 to vector<16x128xf32>
    %54 = arith.mulf %52, %53 : vector<16x128xf32>
    %55 = math.exp %54 : vector<16x128xf32>
    %56 = arith.mulf %50, %55 : vector<16x128xf32>
    %57 = vector.extract_strided_slice %6 {offsets = [0, 0], sizes = [16, 128], strides = [1, 1]} : vector<64x128xf32> to vector<16x128xf32>
    %58 = arith.mulf %56, %57 : vector<16x128xf32>
    %cst_9 = arith.constant 5.2083336E-4 : f32
    %cst_10 = arith.constant 0.000000e+00 : f32
    %59 = vector.broadcast %cst_9 : f32 to vector<16x128xf32>
    %60 = vector.broadcast %cst_10 : f32 to vector<16x128xf32>
    %61 = arith.select %44, %59, %60 : vector<16x128xi1>, vector<16x128xf32>
    %cst_11 = arith.constant 0.000000e+00 : f32
    %62 = vector.broadcast %cst_11 : f32 to vector<16x128xf32>
    %63 = arith.subf %62, %28 : vector<16x128xf32>
    %cst_12 = arith.constant 1.000000e+01 : f32
    %64 = vector.broadcast %cst_12 : f32 to vector<16x128xf32>
    %65 = arith.mulf %63, %64 : vector<16x128xf32>
    %66 = math.exp %65 : vector<16x128xf32>
    %67 = arith.mulf %61, %66 : vector<16x128xf32>
    %68 = vector.extract_strided_slice %8 {offsets = [0, 0], sizes = [16, 128], strides = [1, 1]} : vector<64x128xf32> to vector<16x128xf32>
    %69 = arith.mulf %67, %68 : vector<16x128xf32>
    %70 = arith.addf %58, %69 : vector<16x128xf32>
    %cst_13 = arith.constant 5.55555569E-4 : f32
    %cst_14 = arith.constant 0.000000e+00 : f32
    %71 = vector.broadcast %cst_13 : f32 to vector<16x128xf32>
    %72 = vector.broadcast %cst_14 : f32 to vector<16x128xf32>
    %73 = arith.select %47, %71, %72 : vector<16x128xi1>, vector<16x128xf32>
    %cst_15 = arith.constant 0.000000e+00 : f32
    %74 = vector.broadcast %cst_15 : f32 to vector<16x128xf32>
    %75 = arith.subf %74, %30 : vector<16x128xf32>
    %cst_16 = arith.constant 1.000000e+01 : f32
    %76 = vector.broadcast %cst_16 : f32 to vector<16x128xf32>
    %77 = arith.mulf %75, %76 : vector<16x128xf32>
    %78 = math.exp %77 : vector<16x128xf32>
    %79 = vector.extract_strided_slice %10 {offsets = [0, 0], sizes = [16, 128], strides = [1, 1]} : vector<64x128xf32> to vector<16x128xf32>
    %80 = arith.mulf %78, %79 : vector<16x128xf32>
    %cst_17 = arith.constant 0.000000e+00 : f32
    %81 = vector.broadcast %cst_17 : f32 to vector<16x128xf32>
    %82 = arith.subf %81, %32 : vector<16x128xf32>
    %cst_18 = arith.constant 1.000000e+01 : f32
    %83 = vector.broadcast %cst_18 : f32 to vector<16x128xf32>
    %84 = arith.mulf %82, %83 : vector<16x128xf32>
    %85 = math.exp %84 : vector<16x128xf32>
    %86 = vector.extract_strided_slice %12 {offsets = [0, 0], sizes = [16, 128], strides = [1, 1]} : vector<64x128xf32> to vector<16x128xf32>
    %87 = arith.mulf %85, %86 : vector<16x128xf32>
    %88 = arith.addf %80, %87 : vector<16x128xf32>
    %89 = arith.mulf %73, %88 : vector<16x128xf32>
    %90 = arith.addf %70, %89 : vector<16x128xf32>
    %91 = vector.shape_cast %90 : vector<16x128xf32> to vector<1x16x128xf32>
    %cst_19 = arith.constant dense<0.000000e+00> : vector<1xf32>
    %92 = vector.multi_reduction <add>, %91, %cst_19 [1, 2] : vector<1x16x128xf32> to vector<1xf32>
    %93 = vector.shape_cast %92 : vector<1xf32> to vector<1x1x1xf32>
    %94 = vector.extract %93[0, 0, 0] : f32 from vector<1x1x1xf32>
    %c0_20 = arith.constant 0 : index
    %c0_21 = arith.constant 0 : index
    %95 = memref.load %arg2[%c0_20, %c0_21] : memref<1x1xf32, #tpu.memory_space<smem>>
    memref.store %94, %arg2[%c0_20, %c0_21] : memref<1x1xf32, #tpu.memory_space<smem>>
    return
  }
  func.func @transform_0(%arg0: i32) -> (i32, i32, i32) {
    %c0_i32 = arith.constant 0 : i32
    %c0_i32_0 = arith.constant 0 : i32
    %c0_i32_1 = arith.constant 0 : i32
    return %c0_i32, %c0_i32_0, %arg0 : i32, i32, i32
  }
  func.func @transform_1(%arg0: i32) -> (i32, i32) {
    %c0_i32 = arith.constant 0 : i32
    %c0_i32_0 = arith.constant 0 : i32
    return %arg0, %c0_i32 : i32, i32
  }
}

</mosaic_0001>

<llo_original>
// kernel: edge_preserving_smoothness_loss.1
$region0: #{edge_preserving_smoothness_loss.1}
  #allocation0 [shape = 'u32[]', space=smem, size = 0x4, offset = 0x4, fixed_abs, tag = 'smem constant byte address 0x4 - core index']
  #allocation1 [shape = 'u32[144,128]{1,0:T(1,128)}', space=vmem, size = 0x12000, scoped, tag = 'internal scratch']
  %s0 = inlined_call_operand.vmem [shape: f32[4,16,128], index: 0, kind: input, shape index: {}]
  %s1 = inlined_call_operand.hbm [shape: f32[1,1], index: 1, kind: output, shape index: {}]
  %s2 = sld [smem:[#allocation0]]
  $region14: #{edge_preserving_smoothness_loss.1} parent=0
    _
  %s4 = ssub.s32 1, %s2
  %s5 = scalar_select 0, %s4, %s2
  $region1: #{edge_preserving_smoothness_loss.1} parent=0
    #allocation2 [shape = 'u8[512]{0}', space=smem, size = 0x200, scoped, tag = 'output window, operand 0, single buffered']
    #allocation3 [shape = 's32[1]{0}', space=sflag, size = 0x4, scoped, tag = 'scoped memory for edge_preserving_smoothness_loss.1']
    %6 = vsyncpa [#allocation3], 0
    // Predicated region
    $region2: #{edge_preserving_smoothness_loss.1} parent=1 // pred_check
      _
    $region3: #{edge_preserving_smoothness_loss.1} parent=1 // pred_check_branch
      %8 = sbr.rel (0) target = $region5
    $region4: #{edge_preserving_smoothness_loss.1} parent=1 // pred_region
      _
    $region5: #{edge_preserving_smoothness_loss.1} parent=1 // pred_fallthru
      _
    %v9 = vld [vmem:[%s0] sm:$0xff]
    %v10 = vld [vmem:[%s0 + $0x8] sm:$0xff]
    %v11 = vld [vmem:[%s0 + $0x10] sm:$0xff]
    %v12 = vld [vmem:[%s0 + $0x18] sm:$0xff]
    %v13 = vld [vmem:[%s0 + $0x20] sm:$0xff]
    %v14 = vld [vmem:[%s0 + $0x28] sm:$0xff]
    %v15 = vld [vmem:[%s0 + $0x30] sm:$0xff]
    %v16 = vld [vmem:[%s0 + $0x38] sm:$0xff]
    %17 = vrot.lane.b32.xlu0 %v9, 127
    %v18 = vpop.permute.xlu0 %17
    %19 = vrot.lane.b32.xlu0 %v10, 127
    %v20 = vpop.permute.xlu0 %19
    %21 = vrot.lane.b32.xlu0 %v11, 127
    %v22 = vpop.permute.xlu0 %21
    %23 = vrot.lane.b32.xlu0 %v12, 127
    %v24 = vpop.permute.xlu0 %23
    %25 = vrot.lane.b32.xlu0 %v13, 127
    %v26 = vpop.permute.xlu0 %25
    %27 = vrot.lane.b32.xlu0 %v14, 127
    %v28 = vpop.permute.xlu0 %27
    %29 = vrot.lane.b32.xlu0 %v15, 127
    %v30 = vpop.permute.xlu0 %29
    %31 = vrot.lane.b32.xlu0 %v16, 127
    %v32 = vpop.permute.xlu0 %31
    %v33 = vrot.slane %v9, 1
    %v34 = vrot.slane %v10, 1
    %v35 = vrot.slane %v11, 1
    %v36 = vrot.slane %v12, 1
    %v37 = vrot.slane %v13, 1
    %v38 = vrot.slane %v14, 1
    %v39 = vrot.slane %v15, 1
    %v40 = vrot.slane %v16, 1
    %v41 = vlaneseq
    %v42 = vshrl.u32 %v41, 7
    %vm43 = vcmp.lt.s32.totalorder %v42, 7
    %v44 = vsel %vm43, %v39, %v40
    %v45 = vsel %vm43, %v38, %v39
    %v46 = vsel %vm43, %v37, %v38
    %v47 = vsel %vm43, %v36, %v37
    %v48 = vsel %vm43, %v35, %v36
    %v49 = vsel %vm43, %v34, %v35
    %v50 = vsel %vm43, %v33, %v34
    %v51 = vsel %vm43, %v40, %v33
    %v52 = vrot.slane %v18, 1
    %v53 = vrot.slane %v20, 1
    %v54 = vrot.slane %v22, 1
    %v55 = vrot.slane %v24, 1
    %v56 = vrot.slane %v26, 1
    %v57 = vrot.slane %v28, 1
    %v58 = vrot.slane %v30, 1
    %v59 = vrot.slane %v32, 1
    %v60 = vsel %vm43, %v58, %v59
    %v61 = vsel %vm43, %v57, %v58
    %v62 = vsel %vm43, %v56, %v57
    %v63 = vsel %vm43, %v55, %v56
    %v64 = vsel %vm43, %v54, %v55
    %v65 = vsel %vm43, %v53, %v54
    %v66 = vsel %vm43, %v52, %v53
    %v67 = vsel %vm43, %v59, %v52
    %v68 = vsub.f32 %v9, %v18
    %v69 = vsub.f32 %v10, %v20
    %v70 = vsub.f32 %v11, %v22
    %v71 = vsub.f32 %v12, %v24
    %v72 = vsub.f32 %v13, %v26
    %v73 = vsub.f32 %v14, %v28
    %v74 = vsub.f32 %v15, %v30
    %v75 = vsub.f32 %v16, %v32
    %v76 = vand.u32 2147483647, %v68
    %v77 = vand.u32 2147483647, %v69
    %v78 = vand.u32 2147483647, %v70
    %v79 = vand.u32 2147483647, %v71
    %v80 = vand.u32 2147483647, %v72
    %v81 = vand.u32 2147483647, %v73
    %v82 = vand.u32 2147483647, %v74
    %v83 = vand.u32 2147483647, %v75
    %v84 = vsub.f32 %v9, %v50
    %v85 = vsub.f32 %v10, %v49
    %v86 = vsub.f32 %v11, %v48
    %v87 = vsub.f32 %v12, %v47
    %v88 = vsub.f32 %v13, %v46
    %v89 = vsub.f32 %v14, %v45
    %v90 = vsub.f32 %v15, %v44
    %v91 = vsub.f32 %v16, %v51
    %v92 = vand.u32 2147483647, %v84
    %v93 = vand.u32 2147483647, %v85
    %v94 = vand.u32 2147483647, %v86
    %v95 = vand.u32 2147483647, %v87
    %v96 = vand.u32 2147483647, %v88
    %v97 = vand.u32 2147483647, %v89
    %v98 = vand.u32 2147483647, %v90
    %v99 = vand.u32 2147483647, %v91
    %v100 = vsub.f32 %v9, %v66
    %v101 = vsub.f32 %v10, %v65
    %v102 = vsub.f32 %v11, %v64
    %v103 = vsub.f32 %v12, %v63
    %v104 = vsub.f32 %v13, %v62
    %v105 = vsub.f32 %v14, %v61
    %v106 = vsub.f32 %v15, %v60
    %v107 = vsub.f32 %v16, %v67
    %v108 = vand.u32 2147483647, %v100
    %v109 = vand.u32 2147483647, %v101
    %v110 = vand.u32 2147483647, %v102
    %v111 = vand.u32 2147483647, %v103
    %v112 = vand.u32 2147483647, %v104
    %v113 = vand.u32 2147483647, %v105
    %v114 = vand.u32 2147483647, %v106
    %v115 = vand.u32 2147483647, %v107
    %v116 = vsub.f32 %v50, %v18
    %v117 = vsub.f32 %v49, %v20
    %v118 = vsub.f32 %v48, %v22
    %v119 = vsub.f32 %v47, %v24
    %v120 = vsub.f32 %v46, %v26
    %v121 = vsub.f32 %v45, %v28
    %v122 = vsub.f32 %v44, %v30
    %v123 = vsub.f32 %v51, %v32
    %v124 = vand.u32 2147483647, %v116
    %v125 = vand.u32 2147483647, %v117
    %v126 = vand.u32 2147483647, %v118
    %v127 = vand.u32 2147483647, %v119
    %v128 = vand.u32 2147483647, %v120
    %v129 = vand.u32 2147483647, %v121
    %v130 = vand.u32 2147483647, %v122
    %v131 = vand.u32 2147483647, %v123
    %v132 = vadd.f32 %v78, %v80
    %v133 = vadd.f32 %v79, %v81
    %v134 = vadd.f32 %v94, %v96
    %v135 = vadd.f32 %v95, %v97
    %v136 = vadd.f32 %v110, %v112
    %v137 = vadd.f32 %v111, %v113
    %v138 = vadd.f32 %v126, %v128
    %v139 = vadd.f32 %v127, %v129
    %v140 = vadd.f32 %v132, %v82
    %v141 = vadd.f32 %v133, %v83
    %v142 = vadd.f32 %v134, %v98
    %v143 = vadd.f32 %v135, %v99
    %v144 = vadd.f32 %v136, %v114
    %v145 = vadd.f32 %v137, %v115
    %v146 = vadd.f32 %v138, %v130
    %v147 = vadd.f32 %v139, %v131
    %v148 = vlaneseq
    %v149 = vand.u32 %v148, 127
    %v150 = vadd.s32 %v42, 8
    %v151 = vand.u32 %v149, 15
    %vm152 = vcmp.lt.s32.totalorder %v149, 128
    %vm153 = vcmp.ne.s32.totalorder %v151, 15
    %vm154 = vmand %vm153, %vm152
    %vm155 = vcmp.ne.s32.totalorder %v42, 15
    %vm156 = vcmp.ne.s32.totalorder %v150, 15
    %vm157 = vmand %vm155, %vm152
    %vm158 = vmand %vm156, %vm152
    %vm159 = vmand %vm154, %vm155
    %vm160 = vmand %vm154, %vm156
    %v161 = vsel %vm154, 0.00052083336, 0.0
    %v162 = vsub.f32 0.0, %v140
    %v163 = vsub.f32 0.0, %v141
    %v164 = vmul.f32 %v162, 10.0
    %v165 = vmul.f32 %v163, 10.0
    %v166 = vmul.f32 %v164, 1.442695
    %v167 = vpow.pop %v166
    %v168 = vmul.f32 %v165, 1.442695
    %v169 = vpow.pop %v168
    %v170 = vmul.f32 %v161, %v167
    %v171 = vmul.f32 %v161, %v169
    %v172 = vmul.f32 %v170, %v76
    %v173 = vmul.f32 %v171, %v77
    %v174 = vsel %vm157, 0.00052083336, 0.0
    %v175 = vsel %vm158, 0.00052083336, 0.0
    %v176 = vsub.f32 0.0, %v142
    %v177 = vsub.f32 0.0, %v143
    %v178 = vmul.f32 %v176, 10.0
    %v179 = vmul.f32 %v177, 10.0
    %v180 = vmul.f32 %v178, 1.442695
    %v181 = vpow.pop %v180
    %v182 = vmul.f32 %v179, 1.442695
    %v183 = vpow.pop %v182
    %v184 = vmul.f32 %v174, %v181
    %v185 = vmul.f32 %v175, %v183
    %v186 = vmul.f32 %v184, %v92
    %v187 = vmul.f32 %v185, %v93
    %v188 = vadd.f32 %v172, %v186
    %v189 = vadd.f32 %v173, %v187
    %v190 = vsel %vm159, 0.00055555557, 0.0
    %v191 = vsel %vm160, 0.00055555557, 0.0
    %v192 = vsub.f32 0.0, %v144
    %v193 = vsub.f32 0.0, %v145
    %v194 = vmul.f32 %v192, 10.0
    %v195 = vmul.f32 %v193, 10.0
    %v196 = vmul.f32 %v194, 1.442695
    %v197 = vpow.pop %v196
    %v198 = vmul.f32 %v195, 1.442695
    %v199 = vpow.pop %v198
    %v200 = vmul.f32 %v197, %v108
    %v201 = vmul.f32 %v199, %v109
    %v202 = vsub.f32 0.0, %v146
    %v203 = vsub.f32 0.0, %v147
    %v204 = vmul.f32 %v202, 10.0
    %v205 = vmul.f32 %v203, 10.0
    %v206 = vmul.f32 %v204, 1.442695
    %v207 = vpow.pop %v206
    %v208 = vmul.f32 %v205, 1.442695
    %v209 = vpow.pop %v208
    %v210 = vmul.f32 %v207, %v124
    %v211 = vmul.f32 %v209, %v125
    %v212 = vadd.f32 %v200, %v210
    %v213 = vadd.f32 %v201, %v211
    %v214 = vmul.f32 %v190, %v212
    %v215 = vmul.f32 %v191, %v213
    %v216 = vadd.f32 %v188, %v214
    %v217 = vadd.f32 %v189, %v215
    %v218 = vadd.f32 %v216, %v217
    %219 = vadd.xlane.f32.xlu0 %v218
    %v220 = vpop.xlane.xlu0 %219
    %v221 = vrot.slane %v220, 4
    %v222 = vadd.f32 %v220, %v221
    %v223 = vrot.slane %v222, 2
    %v224 = vadd.f32 %v222, %v223
    %v225 = vrot.slane %v224, 1
    %v226 = vadd.f32 %v224, %v225
    %s227 = vtos %v226
    %s228 = scalar_lea.smem [#allocation2], 0
    %229 = sst [smem:[%s228]] %s227
    // Predicated region
    $region6: #{edge_preserving_smoothness_loss.1} parent=1 // pred_check
      _
    $region7: #{edge_preserving_smoothness_loss.1} parent=1 // pred_check_branch
      %231 = sbr.rel (0) target = $region9
    $region8: #{edge_preserving_smoothness_loss.1} parent=1 // pred_region
      %s233 = ssub.s32 16, 16
      %234 = vsyncadd [#allocation3], %s233
      %237 = dma.smem_to_hbm [#allocation2], 16, %s1, [#allocation3]
    $region9: #{edge_preserving_smoothness_loss.1} parent=1 // pred_fallthru
      _
    // Predicated region
    $region10: #{edge_preserving_smoothness_loss.1} parent=1 // pred_check
      _
    $region11: #{edge_preserving_smoothness_loss.1} parent=1 // pred_check_branch
      %239 = sbr.rel (0) target = $region13
    $region12: #{edge_preserving_smoothness_loss.1} parent=1 // pred_region
      %240 = dma.done [#allocation3], 16
    $region13: #{edge_preserving_smoothness_loss.1} parent=1 // pred_fallthru
      _
    %241 = sfence
    %242 = vsyncpa [#allocation3], 1

</llo_original>
